<compile_context>
chip_gen: v6e
topology: v6e:2x2x1
jax: 0.10.0
libtpu: 0.0.40
codegen_flags: <defaults>
</compile_context>

<pallas_src>
import functools

import jax
import jax.numpy as jnp
from jax.experimental import pallas as pl
from jax.experimental.pallas import tpu as pltpu

STATE_DIM = 24
ACTION_DIM = 2
HIDDEN_DIM = 512
LOG_STD_MIN = -20.0
LOG_STD_MAX = 2.0


def _round_up(x, m):
    return ((x + m - 1) // m) * m


def _policy_kernel(x_ref, w1_ref, b1_ref, w2_ref, b2_ref, wh_ref, bh_ref,
                   out_ref):
    # bf16 operands feed the MXU with f32 accumulation; ReLU / clamp on the VPU.
    x = x_ref[...]                                               # (bt, 24) bf16

    h1 = jnp.dot(x, w1_ref[...], preferred_element_type=jnp.float32) + b1_ref[...]
    h1 = jnp.maximum(h1, 0.0).astype(jnp.bfloat16)

    h2 = jnp.dot(h1, w2_ref[...], preferred_element_type=jnp.float32) + b2_ref[...]
    h2 = jnp.maximum(h2, 0.0).astype(jnp.bfloat16)

    # fused mean||log_std head: one (512, 4) matmul instead of two (512, 2).
    head = jnp.dot(h2, wh_ref[...], preferred_element_type=jnp.float32) + bh_ref[...]

    # clamp only the log_std half (columns >= ACTION_DIM), leave mean untouched.
    col = jax.lax.broadcasted_iota(jnp.int32, head.shape, 1)
    clipped = jnp.clip(head, LOG_STD_MIN, LOG_STD_MAX)
    out_ref[...] = jnp.where(col >= ACTION_DIM, clipped, head)


@functools.partial(jax.jit, static_argnames=("batch_tile",))
def policy_forward(state, params, batch_tile=256):
    """PolicyNetwork.forward. Returns (mean, log_std), each (B, ACTION_DIM) f32."""
    B = state.shape[0]
    w1, b1, w2, b2, wm, bm, ws, bs = params

    # Fuse the two 2-wide heads into a single (HIDDEN_DIM, 2*ACTION_DIM) matmul.
    wh = jnp.concatenate([wm, ws], axis=1)
    bh = jnp.concatenate([bm, bs], axis=1)

    # MXU-friendly batch tile; pad the batch so the grid divides evenly.
    bt = min(batch_tile, _round_up(B, 8))
    B_pad = _round_up(B, bt)
    x = state.astype(jnp.bfloat16)
    if B_pad != B:
        x = jnp.pad(x, ((0, B_pad - B), (0, 0)))

    grid = (B_pad // bt,)

    # state / output tiled along the batch; weights + biases are whole-array
    # blocks reused at every grid step (stay resident in VMEM).
    state_spec = pl.BlockSpec((bt, STATE_DIM), lambda i: (i, 0))
    full = lambda shp: pl.BlockSpec(shp, lambda i: (0, 0))
    out_spec = pl.BlockSpec((bt, 2 * ACTION_DIM), lambda i: (i, 0))

    flops = 2 * B_pad * (STATE_DIM * HIDDEN_DIM
                         + HIDDEN_DIM * HIDDEN_DIM
                         + HIDDEN_DIM * 2 * ACTION_DIM)
    bytes_accessed = (x.size * x.dtype.itemsize
                      + sum(a.size * a.dtype.itemsize
                            for a in (w1, b1, w2, b2, wh, bh))
                      + B_pad * 2 * ACTION_DIM * 4)

    out = pl.pallas_call(
        _policy_kernel,
        out_shape=jax.ShapeDtypeStruct((B_pad, 2 * ACTION_DIM), jnp.float32),
        grid_spec=pltpu.PrefetchScalarGridSpec(
            num_scalar_prefetch=0,
            grid=grid,
            in_specs=[
                state_spec,
                full(w1.shape), full(b1.shape),
                full(w2.shape), full(b2.shape),
                full(wh.shape), full(bh.shape),
            ],
            out_specs=out_spec,
        ),
        compiler_params=pltpu.CompilerParams(
            dimension_semantics=("parallel",)),
        cost_estimate=pl.CostEstimate(
            flops=flops, transcendentals=0, bytes_accessed=bytes_accessed),
    )(x, w1, b1, w2, b2, wh, bh)

    mean = out[:B, :ACTION_DIM]
    log_std = out[:B, ACTION_DIM:]
    return mean, log_std


def _xavier_uniform(key, fan_in, fan_out):
    # matches torch.nn.init.xavier_uniform_ with gain=1; stored (in, out), bf16.
    limit = jnp.sqrt(6.0 / (fan_in + fan_out))
    w = jax.random.uniform(key, (fan_in, fan_out), jnp.float32, -limit, limit)
    return w.astype(jnp.bfloat16)


def init_params(key):
    k1, k2, k3, k4 = jax.random.split(key, 4)
    w1 = _xavier_uniform(k1, STATE_DIM, HIDDEN_DIM)
    b1 = jnp.zeros((1, HIDDEN_DIM), jnp.float32)
    w2 = _xavier_uniform(k2, HIDDEN_DIM, HIDDEN_DIM)
    b2 = jnp.zeros((1, HIDDEN_DIM), jnp.float32)
    wm = _xavier_uniform(k3, HIDDEN_DIM, ACTION_DIM)
    bm = jnp.zeros((1, ACTION_DIM), jnp.float32)
    ws = _xavier_uniform(k4, HIDDEN_DIM, ACTION_DIM)
    bs = jnp.zeros((1, ACTION_DIM), jnp.float32)
    return (w1, b1, w2, b2, wm, bm, ws, bs)


def _reference_forward(state, params):
    # same bf16-operand / f32-accumulate math as the kernel, in plain XLA.
    w1, b1, w2, b2, wm, bm, ws, bs = params
    x = state.astype(jnp.bfloat16)
    h = jnp.maximum(jnp.dot(x, w1, preferred_element_type=jnp.float32) + b1, 0.0)
    h = jnp.maximum(
        jnp.dot(h.astype(jnp.bfloat16), w2, preferred_element_type=jnp.float32) + b2,
        0.0)
    hb = h.astype(jnp.bfloat16)
    mean = jnp.dot(hb, wm, preferred_element_type=jnp.float32) + bm
    log_std = jnp.clip(
        jnp.dot(hb, ws, preferred_element_type=jnp.float32) + bs,
        LOG_STD_MIN, LOG_STD_MAX)
    return mean, log_std


if __name__ == "__main__":
    key = jax.random.PRNGKey(0)
    pkey, skey = jax.random.split(key)

    params = init_params(pkey)

    # small check: B=8 -> single grid step.
    state = jax.random.normal(skey, (8, STATE_DIM), jnp.float32)
    mean, log_std = policy_forward(state, params)
    jax.block_until_ready((mean, log_std))
    ref_mean, ref_log_std = _reference_forward(state, params)
    assert mean.shape == (8, ACTION_DIM) and log_std.shape == (8, ACTION_DIM)
    assert jnp.allclose(mean, ref_mean, atol=5e-2, rtol=5e-2)
    assert jnp.allclose(log_std, ref_log_std, atol=5e-2, rtol=5e-2)

    # padded / multi-tile check: B=200, batch_tile=128 -> padded to 256, grid=(2,).
    state_big = jax.random.normal(skey, (200, STATE_DIM), jnp.float32)
    mean_b, log_std_b = policy_forward(state_big, params, batch_tile=128)
    jax.block_until_ready((mean_b, log_std_b))
    ref_mean_b, ref_log_std_b = _reference_forward(state_big, params)
    assert mean_b.shape == (200, ACTION_DIM) and log_std_b.shape == (200, ACTION_DIM)
    assert jnp.allclose(mean_b, ref_mean_b, atol=5e-2, rtol=5e-2)
    assert jnp.allclose(log_std_b, ref_log_std_b, atol=5e-2, rtol=5e-2)

    # TODO(synk): PolicyNetwork.sample() (rsample/tanh/log_prob) is a separate
    # stochastic method, not part of forward(); not implemented in the kernel.
    print("KERNEL_OK")
</pallas_src>

<mosaic_0001>
module attributes {stable_mosaic.version = 11 : i64} {
  func.func @_policy_kernel(%arg0: i32, %arg1: memref<8x24xbf16, #tpu.memory_space<vmem>>, %arg2: memref<24x512xbf16, #tpu.memory_space<vmem>>, %arg3: memref<1x512xf32, #tpu.memory_space<vmem>>, %arg4: memref<512x512xbf16, #tpu.memory_space<vmem>>, %arg5: memref<1x512xf32, #tpu.memory_space<vmem>>, %arg6: memref<512x4xbf16, #tpu.memory_space<vmem>>, %arg7: memref<1x4xf32, #tpu.memory_space<vmem>>, %arg8: memref<8x4xf32, #tpu.memory_space<vmem>>) attributes {dimension_semantics = [#tpu.dimension_semantics<parallel>], iteration_bounds = array<i64: 1>, scalar_prefetch = 0 : i64, scratch_operands = 0 : i64, tpu.core_type = #tpu.core_type<tc>, window_params = [{transform_indices = @transform_0, window_bounds = array<i64: 8, 24>}, {pipeline_mode = #tpu.pipeline_mode<synchronous>, transform_indices = @transform_1, window_bounds = array<i64: 24, 512>}, {pipeline_mode = #tpu.pipeline_mode<synchronous>, transform_indices = @transform_2, window_bounds = array<i64: 1, 512>}, {pipeline_mode = #tpu.pipeline_mode<synchronous>, transform_indices = @transform_3, window_bounds = array<i64: 512, 512>}, {pipeline_mode = #tpu.pipeline_mode<synchronous>, transform_indices = @transform_4, window_bounds = array<i64: 1, 512>}, {pipeline_mode = #tpu.pipeline_mode<synchronous>, transform_indices = @transform_5, window_bounds = array<i64: 512, 4>}, {pipeline_mode = #tpu.pipeline_mode<synchronous>, transform_indices = @transform_6, window_bounds = array<i64: 1, 4>}, {transform_indices = @transform_7, window_bounds = array<i64: 8, 4>}]} {
    %c0 = arith.constant 0 : index
    %c0_0 = arith.constant 0 : index
    %0 = vector.load %arg1[%c0, %c0_0] : memref<8x24xbf16, #tpu.memory_space<vmem>>, vector<8x24xbf16>
    %c0_1 = arith.constant 0 : index
    %c0_2 = arith.constant 0 : index
    %1 = vector.load %arg2[%c0_1, %c0_2] : memref<24x512xbf16, #tpu.memory_space<vmem>>, vector<24x512xbf16>
    %cst = arith.constant dense<0.000000e+00> : vector<8x512xf32>
    %2 = tpu.matmul %0, %1, %cst {dimension_numbers = #tpu.dot_dimension_numbers<[1], [0], [0], [1], [0, 0, 1, 1], [], []>} : vector<8x24xbf16>, vector<24x512xbf16>, vector<8x512xf32> -> vector<8x512xf32>
    %c0_3 = arith.constant 0 : index
    %c0_4 = arith.constant 0 : index
    %3 = vector.load %arg3[%c0_3, %c0_4] : memref<1x512xf32, #tpu.memory_space<vmem>>, vector<1x512xf32>
    %4 = vector.broadcast %3 : vector<1x512xf32> to vector<8x512xf32>
    %5 = arith.addf %2, %4 : vector<8x512xf32>
    %cst_5 = arith.constant 0.000000e+00 : f32
    %6 = vector.broadcast %cst_5 : f32 to vector<8x512xf32>
    %7 = arith.maximumf %5, %6 : vector<8x512xf32>
    %8 = arith.truncf %7 : vector<8x512xf32> to vector<8x512xbf16>
    %c0_6 = arith.constant 0 : index
    %c0_7 = arith.constant 0 : index
    %9 = vector.load %arg4[%c0_6, %c0_7] : memref<512x512xbf16, #tpu.memory_space<vmem>>, vector<512x512xbf16>
    %cst_8 = arith.constant dense<0.000000e+00> : vector<8x512xf32>
    %10 = tpu.matmul %8, %9, %cst_8 {dimension_numbers = #tpu.dot_dimension_numbers<[1], [0], [0], [1], [0, 0, 1, 1], [], []>} : vector<8x512xbf16>, vector<512x512xbf16>, vector<8x512xf32> -> vector<8x512xf32>
    %c0_9 = arith.constant 0 : index
    %c0_10 = arith.constant 0 : index
    %11 = vector.load %arg5[%c0_9, %c0_10] : memref<1x512xf32, #tpu.memory_space<vmem>>, vector<1x512xf32>
    %12 = vector.broadcast %11 : vector<1x512xf32> to vector<8x512xf32>
    %13 = arith.addf %10, %12 : vector<8x512xf32>
    %cst_11 = arith.constant 0.000000e+00 : f32
    %14 = vector.broadcast %cst_11 : f32 to vector<8x512xf32>
    %15 = arith.maximumf %13, %14 : vector<8x512xf32>
    %16 = arith.truncf %15 : vector<8x512xf32> to vector<8x512xbf16>
    %c0_12 = arith.constant 0 : index
    %c0_13 = arith.constant 0 : index
    %17 = vector.load %arg6[%c0_12, %c0_13] : memref<512x4xbf16, #tpu.memory_space<vmem>>, vector<512x4xbf16>
    %cst_14 = arith.constant dense<0.000000e+00> : vector<8x4xf32>
    %18 = tpu.matmul %16, %17, %cst_14 {dimension_numbers = #tpu.dot_dimension_numbers<[1], [0], [0], [1], [0, 0, 1, 1], [], []>} : vector<8x512xbf16>, vector<512x4xbf16>, vector<8x4xf32> -> vector<8x4xf32>
    %c0_15 = arith.constant 0 : index
    %c0_16 = arith.constant 0 : index
    %19 = vector.load %arg7[%c0_15, %c0_16] : memref<1x4xf32, #tpu.memory_space<vmem>>, vector<1x4xf32>
    %20 = vector.broadcast %19 : vector<1x4xf32> to vector<8x4xf32>
    %21 = arith.addf %18, %20 : vector<8x4xf32>
    %22 = tpu.iota {dimensions = array<i32: 1>} : vector<8x4xi32>
    %cst_17 = arith.constant -2.000000e+01 : f32
    %cst_18 = arith.constant 2.000000e+00 : f32
    %23 = vector.broadcast %cst_17 : f32 to vector<8x4xf32>
    %24 = arith.maximumf %23, %21 : vector<8x4xf32>
    %25 = vector.broadcast %cst_18 : f32 to vector<8x4xf32>
    %26 = arith.minimumf %25, %24 : vector<8x4xf32>
    %c2_i32 = arith.constant 2 : i32
    %27 = vector.broadcast %c2_i32 : i32 to vector<8x4xi32>
    %28 = arith.cmpi sge, %22, %27 : vector<8x4xi32>
    %29 = arith.select %28, %26, %21 : vector<8x4xi1>, vector<8x4xf32>
    %c0_19 = arith.constant 0 : index
    %c0_20 = arith.constant 0 : index
    %30 = vector.load %arg8[%c0_19, %c0_20] : memref<8x4xf32, #tpu.memory_space<vmem>>, vector<8x4xf32>
    tpu.vector_store %arg8[%c0_19, %c0_20], %29 {strides = array<i32>} : memref<8x4xf32, #tpu.memory_space<vmem>>, vector<8x4xf32>,
    return
  }
  func.func @transform_0(%arg0: i32) -> (i32, i32) {
    %c0_i32 = arith.constant 0 : i32
    %c0_i32_0 = arith.constant 0 : i32
    return %arg0, %c0_i32 : i32, i32
  }
  func.func @transform_1(%arg0: i32) -> (i32, i32) {
    %c0_i32 = arith.constant 0 : i32
    %c0_i32_0 = arith.constant 0 : i32
    %c0_i32_1 = arith.constant 0 : i32
    return %c0_i32, %c0_i32_0 : i32, i32
  }
  func.func @transform_2(%arg0: i32) -> (i32, i32) {
    %c0_i32 = arith.constant 0 : i32
    %c0_i32_0 = arith.constant 0 : i32
    %c0_i32_1 = arith.constant 0 : i32
    return %c0_i32, %c0_i32_0 : i32, i32
  }
  func.func @transform_3(%arg0: i32) -> (i32, i32) {
    %c0_i32 = arith.constant 0 : i32
    %c0_i32_0 = arith.constant 0 : i32
    %c0_i32_1 = arith.constant 0 : i32
    return %c0_i32, %c0_i32_0 : i32, i32
  }
  func.func @transform_4(%arg0: i32) -> (i32, i32) {
    %c0_i32 = arith.constant 0 : i32
    %c0_i32_0 = arith.constant 0 : i32
    %c0_i32_1 = arith.constant 0 : i32
    return %c0_i32, %c0_i32_0 : i32, i32
  }
  func.func @transform_5(%arg0: i32) -> (i32, i32) {
    %c0_i32 = arith.constant 0 : i32
    %c0_i32_0 = arith.constant 0 : i32
    %c0_i32_1 = arith.constant 0 : i32
    return %c0_i32, %c0_i32_0 : i32, i32
  }
  func.func @transform_6(%arg0: i32) -> (i32, i32) {
    %c0_i32 = arith.constant 0 : i32
    %c0_i32_0 = arith.constant 0 : i32
    %c0_i32_1 = arith.constant 0 : i32
    return %c0_i32, %c0_i32_0 : i32, i32
  }
  func.func @transform_7(%arg0: i32) -> (i32, i32) {
    %c0_i32 = arith.constant 0 : i32
    %c0_i32_0 = arith.constant 0 : i32
    return %arg0, %c0_i32 : i32, i32
  }
}

</mosaic_0001>

<llo_original>
// kernel: policy_forward.1
$region0: #{policy_forward.1}
  #allocation0 [shape = 'u32[]', space=smem, size = 0x4, offset = 0x4, fixed_abs, tag = 'smem constant byte address 0x4 - core index']
  #allocation1 [shape = 'u32[144,128]{1,0:T(1,128)}', space=vmem, size = 0x12000, scoped, tag = 'internal scratch']
  %s0 = inlined_call_operand.vmem [shape: bf16[8,24], index: 0, kind: input, shape index: {}]
  %s1 = inlined_call_operand.vmem [shape: bf16[24,512], index: 1, kind: input, shape index: {}]
  %s2 = inlined_call_operand.vmem [shape: f32[1,512], index: 2, kind: input, shape index: {}]
  %s3 = inlined_call_operand.hbm [shape: bf16[512,512], index: 3, kind: input, shape index: {}]
  %s4 = inlined_call_operand.vmem [shape: f32[1,512], index: 4, kind: input, shape index: {}]
  %s5 = inlined_call_operand.vmem [shape: bf16[512,4], index: 5, kind: input, shape index: {}]
  %s6 = inlined_call_operand.vmem [shape: f32[1,4], index: 6, kind: input, shape index: {}]
  %s7 = inlined_call_operand.vmem [shape: f32[8,4], index: 7, kind: output, shape index: {}]
  %s8 = sld [smem:[#allocation0]]
  $region42: #{policy_forward.1} parent=0
    _
  %s10 = ssub.s32 1, %s8
  %s11 = scalar_select 0, %s10, %s8
  $region1: #{policy_forward.1} parent=0
    #allocation2 [shape = 'u8[524288]{0}', space=vmem, size = 0x80000, scoped, tag = 'input window, operand 3, single buffered']
    #allocation3 [shape = 's32[1]{0}', space=sflag, size = 0x4, scoped, tag = 'scoped memory for policy_forward.1']
    %12 = vsyncpa [#allocation3], 0
    // Predicated region
    $region2: #{policy_forward.1} parent=1 // pred_check
      _
    $region3: #{policy_forward.1} parent=1 // pred_check_branch
      %14 = sbr.rel (0) target = $region5
    $region4: #{policy_forward.1} parent=1 // pred_region
      _
    $region5: #{policy_forward.1} parent=1 // pred_fallthru
      _
    // Predicated region
    $region6: #{policy_forward.1} parent=1 // pred_check
      _
    $region7: #{policy_forward.1} parent=1 // pred_check_branch
      %16 = sbr.rel (0) target = $region9
    $region8: #{policy_forward.1} parent=1 // pred_region
      _
    $region9: #{policy_forward.1} parent=1 // pred_fallthru
      _
    // Predicated region
    $region10: #{policy_forward.1} parent=1 // pred_check
      _
    $region11: #{policy_forward.1} parent=1 // pred_check_branch
      %18 = sbr.rel (0) target = $region13
    $region12: #{policy_forward.1} parent=1 // pred_region
      _
    $region13: #{policy_forward.1} parent=1 // pred_fallthru
      _
    // Predicated region
    $region14: #{policy_forward.1} parent=1 // pred_check
      _
    $region15: #{policy_forward.1} parent=1 // pred_check_branch
      %20 = sbr.rel (0) target = $region17
    $region16: #{policy_forward.1} parent=1 // pred_region
      %s22 = ssub.s32 16384, 16384
      %23 = vsyncadd [#allocation3], %s22
      %s24 = sshll.u32 [#allocation2], 4
      %s25 = int_to_ptr.vmem [resolvable:$true] %s24
      %30 = dma.hbm_to_vmem [thread:$0]  %s3, 16384, %s25, [#allocation3], 256, 256, 16
    $region17: #{policy_forward.1} parent=1 // pred_fallthru
      _
    // Predicated region
    $region18: #{policy_forward.1} parent=1 // pred_check
      _
    $region19: #{policy_forward.1} parent=1 // pred_check_branch
      %32 = sbr.rel (0) target = $region21
    $region20: #{policy_forward.1} parent=1 // pred_region
      _
    $region21: #{policy_forward.1} parent=1 // pred_fallthru
      _
    // Predicated region
    $region22: #{policy_forward.1} parent=1 // pred_check
      _
    $region23: #{policy_forward.1} parent=1 // pred_check_branch
      %34 = sbr.rel (0) target = $region25
    $region24: #{policy_forward.1} parent=1 // pred_region
      _
    $region25: #{policy_forward.1} parent=1 // pred_fallthru
      _
    // Predicated region
    $region26: #{policy_forward.1} parent=1 // pred_check
      _
    $region27: #{policy_forward.1} parent=1 // pred_check_branch
      %36 = sbr.rel (0) target = $region29
    $region28: #{policy_forward.1} parent=1 // pred_region
      _
    $region29: #{policy_forward.1} parent=1 // pred_fallthru
      _
    // Predicated region
    $region30: #{policy_forward.1} parent=1 // pred_check
      _
    $region31: #{policy_forward.1} parent=1 // pred_check_branch
      %38 = sbr.rel (0) target = $region33
    $region32: #{policy_forward.1} parent=1 // pred_region
      %39 = dma.done [#allocation3], 16384
    $region33: #{policy_forward.1} parent=1 // pred_fallthru
      _
    %v41 = vld [vmem:[%s0] sm:$0xf]
    %v42 = vld [vmem:[%s1] sm:$0xff]
    %v43 = vld [vmem:[%s1 + $0x8] sm:$0xff]
    %v44 = vld [vmem:[%s1 + $0x10] sm:$0xff]
    %v45 = vld [vmem:[%s1 + $0x18] sm:$0xff]
    %v46 = vld [vmem:[%s1 + $0x20] sm:$0xff]
    %v47 = vld [vmem:[%s1 + $0x28] sm:$0xff]
    %v48 = vld [vmem:[%s2] sm:$0xf]
    %v50 = vlaneseq
    %v51 = vshrl.u32 %v50, 7
    %v52 = vsub.s32 0, %v51
    %v53 = vrot.slane %v48, %v52
    %v54 = vlaneseq
    %v55 = vshrl.u32 %v54, 7
    %v56 = vsub.s32 1, %v55
    %v57 = vrot.slane %v48, %v56
    %v58 = vlaneseq
    %v59 = vshrl.u32 %v58, 7
    %v60 = vsub.s32 2, %v59
    %v61 = vrot.slane %v48, %v60
    %v62 = vlaneseq
    %v63 = vshrl.u32 %v62, 7
    %v64 = vsub.s32 3, %v63
    %v65 = vrot.slane %v48, %v64
    %v76 = vunpack.c.l.b16 %v42
    %v77 = vunpack.c.h.b16 %v42
    %v78 = vunpack.c.l.b16 %v43
    %v79 = vunpack.c.h.b16 %v43
    %v80 = vunpack.c.l.b16 %v44
    %v81 = vunpack.c.h.b16 %v44
    %v82 = vunpack.c.l.b16 %v45
    %v83 = vunpack.c.h.b16 %v45
    %v84 = vunpack.c.l.b16 %v46
    %v85 = vunpack.c.h.b16 %v46
    %v86 = vunpack.c.l.b16 %v47
    %v87 = vunpack.c.h.b16 %v47
    %v88 = vpack.c.b16 %v80, %v76
    %v89 = vpack.c.b16 %v81, %v77
    %v90 = vpack.c.b16 %v82, %v78
    %v91 = vpack.c.b16 %v83, %v79
    %v92 = vpack.c.b16 %v84, %v84
    %v93 = vpack.c.b16 %v85, %v85
    %v94 = vpack.c.b16 %v86, %v86
    %v95 = vpack.c.b16 %v87, %v87
    %vm100 = vcmask 195584
    %v102 = vsel %vm100, %v41, 0
    %vm104 = vcmask 1043456
    %v106 = vsel %vm104, %v92, 0
    %v109 = vsel %vm104, %v93, 0
    %v112 = vsel %vm104, %v94, 0
    %v115 = vsel %vm104, %v95, 0
    %117 = vmatprep.subr.bf16.mxu0 0
    %118 = vmatpush1.bf16.msra.mxu0 0
    %119 = vmatprep.subr.bf16.mxu0 0
    %120 = vmatpush1.bf16.msra.mxu0 0
    %121 = vmatprep.subr.bf16.mxu0 0
    %122 = vmatpush1.bf16.msra.mxu0 0
    %123 = vmatprep.subr.bf16.mxu0 0
    %124 = vmatpush1.bf16.msra.mxu0 0
    %125 = vmatprep.subr.bf16.mxu0 0
    %126 = vmatpush1.bf16.msra.mxu0 0
    %127 = vmatprep.subr.bf16.mxu0 0
    %128 = vmatpush1.bf16.msra.mxu0 0
    %129 = vmatprep.subr.bf16.mxu0 %v109
    %130 = vmatpush1.bf16.msra.mxu0 %v106
    %131 = vmatprep.subr.bf16.mxu0 %v89
    %132 = vmatpush1.bf16.msra.mxu0 %v88
    %133 = vmatprep.subr.bf16.mxu0 0
    %134 = vmatpush2.bf16.msra.mxu0 0
    %135 = vmatprep.subr.bf16.mxu0 0
    %136 = vmatpush2.bf16.msra.mxu0 0
    %137 = vmatprep.subr.bf16.mxu0 0
    %138 = vmatpush2.bf16.msra.mxu0 0
    %139 = vmatprep.subr.bf16.mxu0 0
    %140 = vmatpush2.bf16.msra.mxu0 0
    %141 = vmatprep.subr.bf16.mxu0 0
    %142 = vmatpush2.bf16.msra.mxu0 0
    %143 = vmatprep.subr.bf16.mxu0 0
    %144 = vmatpush2.bf16.msra.mxu0 0
    %145 = vmatprep.subr.bf16.mxu0 0
    %146 = vmatpush2.bf16.msra.mxu0 0
    %147 = vmatprep.subr.bf16.mxu0 0
    %148 = vmatpush2.bf16.msra.mxu0 0
    %149 = vmatprep.mubr.bf16.mxu0 0
    %150 = vmatmul.mubr.bf16.gmra.mxu0 %v102
    %v151 = vpop.f32.mrf.mxu0
    %v152 = vadd.f32 %v53, %v151
    %v153 = vpop.f32.mrf.mxu0
    %v154 = vadd.f32 %v57, %v153
    %v155 = vpop.f32.mrf.mxu0
    %v156 = vpop.f32.mrf.mxu0
    %157 = vdwg.mxu0
    %158 = vmatprep.subr.bf16.mxu0 0
    %159 = vmatpush1.bf16.msra.mxu0 0
    %160 = vmatprep.subr.bf16.mxu0 0
    %161 = vmatpush1.bf16.msra.mxu0 0
    %162 = vmatprep.subr.bf16.mxu0 0
    %163 = vmatpush1.bf16.msra.mxu0 0
    %164 = vmatprep.subr.bf16.mxu0 0
    %165 = vmatpush1.bf16.msra.mxu0 0
    %166 = vmatprep.subr.bf16.mxu0 0
    %167 = vmatpush1.bf16.msra.mxu0 0
    %168 = vmatprep.subr.bf16.mxu0 0
    %169 = vmatpush1.bf16.msra.mxu0 0
    %170 = vmatprep.subr.bf16.mxu0 %v115
    %171 = vmatpush1.bf16.msra.mxu0 %v112
    %172 = vmatprep.subr.bf16.mxu0 %v91
    %173 = vmatpush1.bf16.msra.mxu0 %v90
    %174 = vmatprep.subr.bf16.mxu0 0
    %175 = vmatpush2.bf16.msra.mxu0 0
    %176 = vmatprep.subr.bf16.mxu0 0
    %177 = vmatpush2.bf16.msra.mxu0 0
    %178 = vmatprep.subr.bf16.mxu0 0
    %179 = vmatpush2.bf16.msra.mxu0 0
    %180 = vmatprep.subr.bf16.mxu0 0
    %181 = vmatpush2.bf16.msra.mxu0 0
    %182 = vmatprep.subr.bf16.mxu0 0
    %183 = vmatpush2.bf16.msra.mxu0 0
    %184 = vmatprep.subr.bf16.mxu0 0
    %185 = vmatpush2.bf16.msra.mxu0 0
    %186 = vmatprep.subr.bf16.mxu0 0
    %187 = vmatpush2.bf16.msra.mxu0 0
    %188 = vmatprep.subr.bf16.mxu0 0
    %189 = vmatpush2.bf16.msra.mxu0 0
    %190 = vmatprep.mubr.bf16.mxu0 0
    %191 = vmatmul.mubr.bf16.gmra.mxu0 %v102
    %v192 = vpop.f32.mrf.mxu0
    %v193 = vadd.f32 %v61, %v192
    %v194 = vpop.f32.mrf.mxu0
    %v195 = vadd.f32 %v65, %v194
    %v196 = vpop.f32.mrf.mxu0
    %v197 = vpop.f32.mrf.mxu0
    %198 = vdwg.mxu0
    %v199 = vmax.f32 %v152, 0.0
    %v200 = vmax.f32 %v154, 0.0
    %v201 = vmax.f32 %v193, 0.0
    %v202 = vmax.f32 %v195, 0.0
    %v203 = vpack.c.bf16 %v199, %v199
    %v204 = vpack.c.bf16 %v200, %v200
    %v205 = vpack.c.bf16 %v201, %v201
    %v206 = vpack.c.bf16 %v202, %v202
    %v207 = vld [vmem:[#allocation2] sm:$0xff]
    %v208 = vld [vmem:[#allocation2 + $0x8] sm:$0xff]
    %v209 = vld [vmem:[#allocation2 + $0x10] sm:$0xff]
    %v210 = vld [vmem:[#allocation2 + $0x18] sm:$0xff]
    %v211 = vld [vmem:[#allocation2 + $0x20] sm:$0xff]
    %v212 = vld [vmem:[#allocation2 + $0x28] sm:$0xff]
    %v213 = vld [vmem:[#allocation2 + $0x30] sm:$0xff]
    %v214 = vld [vmem:[#allocation2 + $0x38] sm:$0xff]
    %v215 = vld [vmem:[#allocation2 + $0x40] sm:$0xff]
    %v216 = vld [vmem:[#allocation2 + $0x48] sm:$0xff]
    %v217 = vld [vmem:[#allocation2 + $0x50] sm:$0xff]
    %v218 = vld [vmem:[#allocation2 + $0x58] sm:$0xff]
    %v219 = vld [vmem:[#allocation2 + $0x60] sm:$0xff]
    %v220 = vld [vmem:[#allocation2 + $0x68] sm:$0xff]
    %v221 = vld [vmem:[#allocation2 + $0x70] sm:$0xff]
    %v222 = vld [vmem:[#allocation2 + $0x78] sm:$0xff]
    %v223 = vld [vmem:[#allocation2 + $0x80] sm:$0xff]
    %v224 = vld [vmem:[#allocation2 + $0x88] sm:$0xff]
    %v225 = vld [vmem:[#allocation2 + $0x90] sm:$0xff]
    %v226 = vld [vmem:[#allocation2 + $0x98] sm:$0xff]
    %v227 = vld [vmem:[#allocation2 + $0xa0] sm:$0xff]
    %v228 = vld [vmem:[#allocation2 + $0xa8] sm:$0xff]
    %v229 = vld [vmem:[#allocation2 + $0xb0] sm:$0xff]
    %v230 = vld [vmem:[#allocation2 + $0xb8] sm:$0xff]
    %v231 = vld [vmem:[#allocation2 + $0xc0] sm:$0xff]
    %v232 = vld [vmem:[#allocation2 + $0xc8] sm:$0xff]
    %v233 = vld [vmem:[#allocation2 + $0xd0] sm:$0xff]
    %v234 = vld [vmem:[#allocation2 + $0xd8] sm:$0xff]
    %v235 = vld [vmem:[#allocation2 + $0xe0] sm:$0xff]
    %v236 = vld [vmem:[#allocation2 + $0xe8] sm:$0xff]
    %v237 = vld [vmem:[#allocation2 + $0xf0] sm:$0xff]
    %v238 = vld [vmem:[#allocation2 + $0xf8] sm:$0xff]
    %v239 = vld [vmem:[#allocation2 + $0x100] sm:$0xff]
    %v240 = vld [vmem:[#allocation2 + $0x108] sm:$0xff]
    %v241 = vld [vmem:[#allocation2 + $0x110] sm:$0xff]
    %v242 = vld [vmem:[#allocation2 + $0x118] sm:$0xff]
    %v243 = vld [vmem:[#allocation2 + $0x120] sm:$0xff]
    %v244 = vld [vmem:[#allocation2 + $0x128] sm:$0xff]
    %v245 = vld [vmem:[#allocation2 + $0x130] sm:$0xff]
    %v246 = vld [vmem:[#allocation2 + $0x138] sm:$0xff]
    %v247 = vld [vmem:[#allocation2 + $0x140] sm:$0xff]
    %v248 = vld [vmem:[#allocation2 + $0x148] sm:$0xff]
    %v249 = vld [vmem:[#allocation2 + $0x150] sm:$0xff]
    %v250 = vld [vmem:[#allocation2 + $0x158] sm:$0xff]
    %v251 = vld [vmem:[#allocation2 + $0x160] sm:$0xff]
    %v252 = vld [vmem:[#allocation2 + $0x168] sm:$0xff]
    %v253 = vld [vmem:[#allocation2 + $0x170] sm:$0xff]
    %v254 = vld [vmem:[#allocation2 + $0x178] sm:$0xff]
    %v255 = vld [vmem:[#allocation2 + $0x180] sm:$0xff]
    %v256 = vld [vmem:[#allocation2 + $0x188] sm:$0xff]
    %v257 = vld [vmem:[#allocation2 + $0x190] sm:$0xff]
    %v258 = vld [vmem:[#allocation2 + $0x198] sm:$0xff]
    %v259 = vld [vmem:[#allocation2 + $0x1a0] sm:$0xff]
    %v260 = vld [vmem:[#allocation2 + $0x1a8] sm:$0xff]
    %v261 = vld [vmem:[#allocation2 + $0x1b0] sm:$0xff]
    %v262 = vld [vmem:[#allocation2 + $0x1b8] sm:$0xff]
    %v263 = vld [vmem:[#allocation2 + $0x1c0] sm:$0xff]
    %v264 = vld [vmem:[#allocation2 + $0x1c8] sm:$0xff]
    %v265 = vld [vmem:[#allocation2 + $0x1d0] sm:$0xff]
    %v266 = vld [vmem:[#allocation2 + $0x1d8] sm:$0xff]
    %v267 = vld [vmem:[#allocation2 + $0x1e0] sm:$0xff]
    %v268 = vld [vmem:[#allocation2 + $0x1e8] sm:$0xff]
    %v269 = vld [vmem:[#allocation2 + $0x1f0] sm:$0xff]
    %v270 = vld [vmem:[#allocation2 + $0x1f8] sm:$0xff]
    %v271 = vld [vmem:[#allocation2 + $0x200] sm:$0xff]
    %v272 = vld [vmem:[#allocation2 + $0x208] sm:$0xff]
    %v273 = vld [vmem:[#allocation2 + $0x210] sm:$0xff]
    %v274 = vld [vmem:[#allocation2 + $0x218] sm:$0xff]
    %v275 = vld [vmem:[#allocation2 + $0x220] sm:$0xff]
    %v276 = vld [vmem:[#allocation2 + $0x228] sm:$0xff]
    %v277 = vld [vmem:[#allocation2 + $0x230] sm:$0xff]
    %v278 = vld [vmem:[#allocation2 + $0x238] sm:$0xff]
    %v279 = vld [vmem:[#allocation2 + $0x240] sm:$0xff]
    %v280 = vld [vmem:[#allocation2 + $0x248] sm:$0xff]
    %v281 = vld [vmem:[#allocation2 + $0x250] sm:$0xff]
    %v282 = vld [vmem:[#allocation2 + $0x258] sm:$0xff]
    %v283 = vld [vmem:[#allocation2 + $0x260] sm:$0xff]
    %v284 = vld [vmem:[#allocation2 + $0x268] sm:$0xff]
    %v285 = vld [vmem:[#allocation2 + $0x270] sm:$0xff]
    %v286 = vld [vmem:[#allocation2 + $0x278] sm:$0xff]
    %v287 = vld [vmem:[#allocation2 + $0x280] sm:$0xff]
    %v288 = vld [vmem:[#allocation2 + $0x288] sm:$0xff]
    %v289 = vld [vmem:[#allocation2 + $0x290] sm:$0xff]
    %v290 = vld [vmem:[#allocation2 + $0x298] sm:$0xff]
    %v291 = vld [vmem:[#allocation2 + $0x2a0] sm:$0xff]
    %v292 = vld [vmem:[#allocation2 + $0x2a8] sm:$0xff]
    %v293 = vld [vmem:[#allocation2 + $0x2b0] sm:$0xff]
    %v294 = vld [vmem:[#allocation2 + $0x2b8] sm:$0xff]
    %v295 = vld [vmem:[#allocation2 + $0x2c0] sm:$0xff]
    %v296 = vld [vmem:[#allocation2 + $0x2c8] sm:$0xff]
    %v297 = vld [vmem:[#allocation2 + $0x2d0] sm:$0xff]
    %v298 = vld [vmem:[#allocation2 + $0x2d8] sm:$0xff]
    %v299 = vld [vmem:[#allocation2 + $0x2e0] sm:$0xff]
    %v300 = vld [vmem:[#allocation2 + $0x2e8] sm:$0xff]
    %v301 = vld [vmem:[#allocation2 + $0x2f0] sm:$0xff]
    %v302 = vld [vmem:[#allocation2 + $0x2f8] sm:$0xff]
    %v303 = vld [vmem:[#allocation2 + $0x300] sm:$0xff]
    %v304 = vld [vmem:[#allocation2 + $0x308] sm:$0xff]
    %v305 = vld [vmem:[#allocation2 + $0x310] sm:$0xff]
    %v306 = vld [vmem:[#allocation2 + $0x318] sm:$0xff]
    %v307 = vld [vmem:[#allocation2 + $0x320] sm:$0xff]
    %v308 = vld [vmem:[#allocation2 + $0x328] sm:$0xff]
    %v309 = vld [vmem:[#allocation2 + $0x330] sm:$0xff]
    %v310 = vld [vmem:[#allocation2 + $0x338] sm:$0xff]
    %v311 = vld [vmem:[#allocation2 + $0x340] sm:$0xff]
    %v312 = vld [vmem:[#allocation2 + $0x348] sm:$0xff]
    %v313 = vld [vmem:[#allocation2 + $0x350] sm:$0xff]
    %v314 = vld [vmem:[#allocation2 + $0x358] sm:$0xff]
    %v315 = vld [vmem:[#allocation2 + $0x360] sm:$0xff]
    %v316 = vld [vmem:[#allocation2 + $0x368] sm:$0xff]
    %v317 = vld [vmem:[#allocation2 + $0x370] sm:$0xff]
    %v318 = vld [vmem:[#allocation2 + $0x378] sm:$0xff]
    %v319 = vld [vmem:[#allocation2 + $0x380] sm:$0xff]
    %v320 = vld [vmem:[#allocation2 + $0x388] sm:$0xff]
    %v321 = vld [vmem:[#allocation2 + $0x390] sm:$0xff]
    %v322 = vld [vmem:[#allocation2 + $0x398] sm:$0xff]
    %v323 = vld [vmem:[#allocation2 + $0x3a0] sm:$0xff]
    %v324 = vld [vmem:[#allocation2 + $0x3a8] sm:$0xff]
    %v325 = vld [vmem:[#allocation2 + $0x3b0] sm:$0xff]
    %v326 = vld [vmem:[#allocation2 + $0x3b8] sm:$0xff]
    %v327 = vld [vmem:[#allocation2 + $0x3c0] sm:$0xff]
    %v328 = vld [vmem:[#allocation2 + $0x3c8] sm:$0xff]
    %v329 = vld [vmem:[#allocation2 + $0x3d0] sm:$0xff]
    %v330 = vld [vmem:[#allocation2 + $0x3d8] sm:$0xff]
    %v331 = vld [vmem:[#allocation2 + $0x3e0] sm:$0xff]
    %v332 = vld [vmem:[#allocation2 + $0x3e8] sm:$0xff]
    %v333 = vld [vmem:[#allocation2 + $0x3f0] sm:$0xff]
    %v334 = vld [vmem:[#allocation2 + $0x3f8] sm:$0xff]
    %v335 = vld [vmem:[%s4] sm:$0xf]
    %v337 = vlaneseq
    %v338 = vshrl.u32 %v337, 7
    %v339 = vsub.s32 0, %v338
    %v340 = vrot.slane %v335, %v339
    %v341 = vlaneseq
    %v342 = vshrl.u32 %v341, 7
    %v343 = vsub.s32 1, %v342
    %v344 = vrot.slane %v335, %v343
    %v345 = vlaneseq
    %v346 = vshrl.u32 %v345, 7
    %v347 = vsub.s32 2, %v346
    %v348 = vrot.slane %v335, %v347
    %v349 = vlaneseq
    %v350 = vshrl.u32 %v349, 7
    %v351 = vsub.s32 3, %v350
    %v352 = vrot.slane %v335, %v351
    %v485 = vunpack.c.l.b16 %v207
    %v486 = vunpack.c.h.b16 %v207
    %v487 = vunpack.c.l.b16 %v208
    %v488 = vunpack.c.h.b16 %v208
    %v489 = vunpack.c.l.b16 %v209
    %v490 = vunpack.c.h.b16 %v209
    %v491 = vunpack.c.l.b16 %v210
    %v492 = vunpack.c.h.b16 %v210
    %v493 = vunpack.c.l.b16 %v211
    %v494 = vunpack.c.h.b16 %v211
    %v495 = vunpack.c.l.b16 %v212
    %v496 = vunpack.c.h.b16 %v212
    %v497 = vunpack.c.l.b16 %v213
    %v498 = vunpack.c.h.b16 %v213
    %v499 = vunpack.c.l.b16 %v214
    %v500 = vunpack.c.h.b16 %v214
    %v501 = vunpack.c.l.b16 %v215
    %v502 = vunpack.c.h.b16 %v215
    %v503 = vunpack.c.l.b16 %v216
    %v504 = vunpack.c.h.b16 %v216
    %v505 = vunpack.c.l.b16 %v217
    %v506 = vunpack.c.h.b16 %v217
    %v507 = vunpack.c.l.b16 %v218
    %v508 = vunpack.c.h.b16 %v218
    %v509 = vunpack.c.l.b16 %v219
    %v510 = vunpack.c.h.b16 %v219
    %v511 = vunpack.c.l.b16 %v220
    %v512 = vunpack.c.h.b16 %v220
    %v513 = vunpack.c.l.b16 %v221
    %v514 = vunpack.c.h.b16 %v221
    %v515 = vunpack.c.l.b16 %v222
    %v516 = vunpack.c.h.b16 %v222
    %v517 = vunpack.c.l.b16 %v223
    %v518 = vunpack.c.h.b16 %v223
    %v519 = vunpack.c.l.b16 %v224
    %v520 = vunpack.c.h.b16 %v224
    %v521 = vunpack.c.l.b16 %v225
    %v522 = vunpack.c.h.b16 %v225
    %v523 = vunpack.c.l.b16 %v226
    %v524 = vunpack.c.h.b16 %v226
    %v525 = vunpack.c.l.b16 %v227
    %v526 = vunpack.c.h.b16 %v227
    %v527 = vunpack.c.l.b16 %v228
    %v528 = vunpack.c.h.b16 %v228
    %v529 = vunpack.c.l.b16 %v229
    %v530 = vunpack.c.h.b16 %v229
    %v531 = vunpack.c.l.b16 %v230
    %v532 = vunpack.c.h.b16 %v230
    %v533 = vunpack.c.l.b16 %v231
    %v534 = vunpack.c.h.b16 %v231
    %v535 = vunpack.c.l.b16 %v232
    %v536 = vunpack.c.h.b16 %v232
    %v537 = vunpack.c.l.b16 %v233
    %v538 = vunpack.c.h.b16 %v233
    %v539 = vunpack.c.l.b16 %v234
    %v540 = vunpack.c.h.b16 %v234
    %v541 = vunpack.c.l.b16 %v235
    %v542 = vunpack.c.h.b16 %v235
    %v543 = vunpack.c.l.b16 %v236
    %v544 = vunpack.c.h.b16 %v236
    %v545 = vunpack.c.l.b16 %v237
    %v546 = vunpack.c.h.b16 %v237
    %v547 = vunpack.c.l.b16 %v238
    %v548 = vunpack.c.h.b16 %v238
    %v549 = vunpack.c.l.b16 %v239
    %v550 = vunpack.c.h.b16 %v239
    %v551 = vunpack.c.l.b16 %v240
    %v552 = vunpack.c.h.b16 %v240
    %v553 = vunpack.c.l.b16 %v241
    %v554 = vunpack.c.h.b16 %v241
    %v555 = vunpack.c.l.b16 %v242
    %v556 = vunpack.c.h.b16 %v242
    %v557 = vunpack.c.l.b16 %v243
    %v558 = vunpack.c.h.b16 %v243
    %v559 = vunpack.c.l.b16 %v244
    %v560 = vunpack.c.h.b16 %v244
    %v561 = vunpack.c.l.b16 %v245
    %v562 = vunpack.c.h.b16 %v245
    %v563 = vunpack.c.l.b16 %v246
    %v564 = vunpack.c.h.b16 %v246
    %v565 = vunpack.c.l.b16 %v247
    %v566 = vunpack.c.h.b16 %v247
    %v567 = vunpack.c.l.b16 %v248
    %v568 = vunpack.c.h.b16 %v248
    %v569 = vunpack.c.l.b16 %v249
    %v570 = vunpack.c.h.b16 %v249
    %v571 = vunpack.c.l.b16 %v250
    %v572 = vunpack.c.h.b16 %v250
    %v573 = vunpack.c.l.b16 %v251
    %v574 = vunpack.c.h.b16 %v251
    %v575 = vunpack.c.l.b16 %v252
    %v576 = vunpack.c.h.b16 %v252
    %v577 = vunpack.c.l.b16 %v253
    %v578 = vunpack.c.h.b16 %v253
    %v579 = vunpack.c.l.b16 %v254
    %v580 = vunpack.c.h.b16 %v254
    %v581 = vunpack.c.l.b16 %v255
    %v582 = vunpack.c.h.b16 %v255
    %v583 = vunpack.c.l.b16 %v256
    %v584 = vunpack.c.h.b16 %v256
    %v585 = vunpack.c.l.b16 %v257
    %v586 = vunpack.c.h.b16 %v257
    %v587 = vunpack.c.l.b16 %v258
    %v588 = vunpack.c.h.b16 %v258
    %v589 = vunpack.c.l.b16 %v259
    %v590 = vunpack.c.h.b16 %v259
    %v591 = vunpack.c.l.b16 %v260
    %v592 = vunpack.c.h.b16 %v260
    %v593 = vunpack.c.l.b16 %v261
    %v594 = vunpack.c.h.b16 %v261
    %v595 = vunpack.c.l.b16 %v262
    %v596 = vunpack.c.h.b16 %v262
    %v597 = vunpack.c.l.b16 %v263
    %v598 = vunpack.c.h.b16 %v263
    %v599 = vunpack.c.l.b16 %v264
    %v600 = vunpack.c.h.b16 %v264
    %v601 = vunpack.c.l.b16 %v265
    %v602 = vunpack.c.h.b16 %v265
    %v603 = vunpack.c.l.b16 %v266
    %v604 = vunpack.c.h.b16 %v266
    %v605 = vunpack.c.l.b16 %v267
    %v606 = vunpack.c.h.b16 %v267
    %v607 = vunpack.c.l.b16 %v268
    %v608 = vunpack.c.h.b16 %v268
    %v609 = vunpack.c.l.b16 %v269
    %v610 = vunpack.c.h.b16 %v269
    %v611 = vunpack.c.l.b16 %v270
    %v612 = vunpack.c.h.b16 %v270
    %v613 = vunpack.c.l.b16 %v271
    %v614 = vunpack.c.h.b16 %v271
    %v615 = vunpack.c.l.b16 %v272
    %v616 = vunpack.c.h.b16 %v272
    %v617 = vunpack.c.l.b16 %v273
    %v618 = vunpack.c.h.b16 %v273
    %v619 = vunpack.c.l.b16 %v274
    %v620 = vunpack.c.h.b16 %v274
    %v621 = vunpack.c.l.b16 %v275
    %v622 = vunpack.c.h.b16 %v275
    %v623 = vunpack.c.l.b16 %v276
    %v624 = vunpack.c.h.b16 %v276
    %v625 = vunpack.c.l.b16 %v277
    %v626 = vunpack.c.h.b16 %v277
    %v627 = vunpack.c.l.b16 %v278
    %v628 = vunpack.c.h.b16 %v278
    %v629 = vunpack.c.l.b16 %v279
    %v630 = vunpack.c.h.b16 %v279
    %v631 = vunpack.c.l.b16 %v280
    %v632 = vunpack.c.h.b16 %v280
    %v633 = vunpack.c.l.b16 %v281
    %v634 = vunpack.c.h.b16 %v281
    %v635 = vunpack.c.l.b16 %v282
    %v636 = vunpack.c.h.b16 %v282
    %v637 = vunpack.c.l.b16 %v283
    %v638 = vunpack.c.h.b16 %v283
    %v639 = vunpack.c.l.b16 %v284
    %v640 = vunpack.c.h.b16 %v284
    %v641 = vunpack.c.l.b16 %v285
    %v642 = vunpack.c.h.b16 %v285
    %v643 = vunpack.c.l.b16 %v286
    %v644 = vunpack.c.h.b16 %v286
    %v645 = vunpack.c.l.b16 %v287
    %v646 = vunpack.c.h.b16 %v287
    %v647 = vunpack.c.l.b16 %v288
    %v648 = vunpack.c.h.b16 %v288
    %v649 = vunpack.c.l.b16 %v289
    %v650 = vunpack.c.h.b16 %v289
    %v651 = vunpack.c.l.b16 %v290
    %v652 = vunpack.c.h.b16 %v290
    %v653 = vunpack.c.l.b16 %v291
    %v654 = vunpack.c.h.b16 %v291
    %v655 = vunpack.c.l.b16 %v292
    %v656 = vunpack.c.h.b16 %v292
    %v657 = vunpack.c.l.b16 %v293
    %v658 = vunpack.c.h.b16 %v293
    %v659 = vunpack.c.l.b16 %v294
    %v660 = vunpack.c.h.b16 %v294
    %v661 = vunpack.c.l.b16 %v295
    %v662 = vunpack.c.h.b16 %v295
    %v663 = vunpack.c.l.b16 %v296
    %v664 = vunpack.c.h.b16 %v296
    %v665 = vunpack.c.l.b16 %v297
    %v666 = vunpack.c.h.b16 %v297
    %v667 = vunpack.c.l.b16 %v298
    %v668 = vunpack.c.h.b16 %v298
    %v669 = vunpack.c.l.b16 %v299
    %v670 = vunpack.c.h.b16 %v299
    %v671 = vunpack.c.l.b16 %v300
    %v672 = vunpack.c.h.b16 %v300
    %v673 = vunpack.c.l.b16 %v301
    %v674 = vunpack.c.h.b16 %v301
    %v675 = vunpack.c.l.b16 %v302
    %v676 = vunpack.c.h.b16 %v302
    %v677 = vunpack.c.l.b16 %v303
    %v678 = vunpack.c.h.b16 %v303
    %v679 = vunpack.c.l.b16 %v304
    %v680 = vunpack.c.h.b16 %v304
    %v681 = vunpack.c.l.b16 %v305
    %v682 = vunpack.c.h.b16 %v305
    %v683 = vunpack.c.l.b16 %v306
    %v684 = vunpack.c.h.b16 %v306
    %v685 = vunpack.c.l.b16 %v307
    %v686 = vunpack.c.h.b16 %v307
    %v687 = vunpack.c.l.b16 %v308
    %v688 = vunpack.c.h.b16 %v308
    %v689 = vunpack.c.l.b16 %v309
    %v690 = vunpack.c.h.b16 %v309
    %v691 = vunpack.c.l.b16 %v310
    %v692 = vunpack.c.h.b16 %v310
    %v693 = vunpack.c.l.b16 %v311
    %v694 = vunpack.c.h.b16 %v311
    %v695 = vunpack.c.l.b16 %v312
    %v696 = vunpack.c.h.b16 %v312
    %v697 = vunpack.c.l.b16 %v313
    %v698 = vunpack.c.h.b16 %v313
    %v699 = vunpack.c.l.b16 %v314
    %v700 = vunpack.c.h.b16 %v314
    %v701 = vunpack.c.l.b16 %v315
    %v702 = vunpack.c.h.b16 %v315
    %v703 = vunpack.c.l.b16 %v316
    %v704 = vunpack.c.h.b16 %v316
    %v705 = vunpack.c.l.b16 %v317
    %v706 = vunpack.c.h.b16 %v317
    %v707 = vunpack.c.l.b16 %v318
    %v708 = vunpack.c.h.b16 %v318
    %v709 = vunpack.c.l.b16 %v319
    %v710 = vunpack.c.h.b16 %v319
    %v711 = vunpack.c.l.b16 %v320
    %v712 = vunpack.c.h.b16 %v320
    %v713 = vunpack.c.l.b16 %v321
    %v714 = vunpack.c.h.b16 %v321
    %v715 = vunpack.c.l.b16 %v322
    %v716 = vunpack.c.h.b16 %v322
    %v717 = vunpack.c.l.b16 %v323
    %v718 = vunpack.c.h.b16 %v323
    %v719 = vunpack.c.l.b16 %v324
    %v720 = vunpack.c.h.b16 %v324
    %v721 = vunpack.c.l.b16 %v325
    %v722 = vunpack.c.h.b16 %v325
    %v723 = vunpack.c.l.b16 %v326
    %v724 = vunpack.c.h.b16 %v326
    %v725 = vunpack.c.l.b16 %v327
    %v726 = vunpack.c.h.b16 %v327
    %v727 = vunpack.c.l.b16 %v328
    %v728 = vunpack.c.h.b16 %v328
    %v729 = vunpack.c.l.b16 %v329
    %v730 = vunpack.c.h.b16 %v329
    %v731 = vunpack.c.l.b16 %v330
    %v732 = vunpack.c.h.b16 %v330
    %v733 = vunpack.c.l.b16 %v331
    %v734 = vunpack.c.h.b16 %v331
    %v735 = vunpack.c.l.b16 %v332
    %v736 = vunpack.c.h.b16 %v332
    %v737 = vunpack.c.l.b16 %v333
    %v738 = vunpack.c.h.b16 %v333
    %v739 = vunpack.c.l.b16 %v334
    %v740 = vunpack.c.h.b16 %v334
    %v741 = vpack.c.b16 %v489, %v485
    %v742 = vpack.c.b16 %v490, %v486
    %v743 = vpack.c.b16 %v491, %v487
    %v744 = vpack.c.b16 %v492, %v488
    %v745 = vpack.c.b16 %v497, %v493
    %v746 = vpack.c.b16 %v498, %v494
    %v747 = vpack.c.b16 %v499, %v495
    %v748 = vpack.c.b16 %v500, %v496
    %v749 = vpack.c.b16 %v505, %v501
    %v750 = vpack.c.b16 %v506, %v502
    %v751 = vpack.c.b16 %v507, %v503
    %v752 = vpack.c.b16 %v508, %v504
    %v753 = vpack.c.b16 %v513, %v509
    %v754 = vpack.c.b16 %v514, %v510
    %v755 = vpack.c.b16 %v515, %v511
    %v756 = vpack.c.b16 %v516, %v512
    %v757 = vpack.c.b16 %v521, %v517
    %v758 = vpack.c.b16 %v522, %v518
    %v759 = vpack.c.b16 %v523, %v519
    %v760 = vpack.c.b16 %v524, %v520
    %v761 = vpack.c.b16 %v529, %v525
    %v762 = vpack.c.b16 %v530, %v526
    %v763 = vpack.c.b16 %v531, %v527
    %v764 = vpack.c.b16 %v532, %v528
    %v765 = vpack.c.b16 %v537, %v533
    %v766 = vpack.c.b16 %v538, %v534
    %v767 = vpack.c.b16 %v539, %v535
    %v768 = vpack.c.b16 %v540, %v536
    %v769 = vpack.c.b16 %v545, %v541
    %v770 = vpack.c.b16 %v546, %v542
    %v771 = vpack.c.b16 %v547, %v543
    %v772 = vpack.c.b16 %v548, %v544
    %v773 = vpack.c.b16 %v553, %v549
    %v774 = vpack.c.b16 %v554, %v550
    %v775 = vpack.c.b16 %v555, %v551
    %v776 = vpack.c.b16 %v556, %v552
    %v777 = vpack.c.b16 %v561, %v557
    %v778 = vpack.c.b16 %v562, %v558
    %v779 = vpack.c.b16 %v563, %v559
    %v780 = vpack.c.b16 %v564, %v560
    %v781 = vpack.c.b16 %v569, %v565
    %v782 = vpack.c.b16 %v570, %v566
    %v783 = vpack.c.b16 %v571, %v567
    %v784 = vpack.c.b16 %v572, %v568
    %v785 = vpack.c.b16 %v577, %v573
    %v786 = vpack.c.b16 %v578, %v574
    %v787 = vpack.c.b16 %v579, %v575
    %v788 = vpack.c.b16 %v580, %v576
    %v789 = vpack.c.b16 %v585, %v581
    %v790 = vpack.c.b16 %v586, %v582
    %v791 = vpack.c.b16 %v587, %v583
    %v792 = vpack.c.b16 %v588, %v584
    %v793 = vpack.c.b16 %v593, %v589
    %v794 = vpack.c.b16 %v594, %v590
    %v795 = vpack.c.b16 %v595, %v591
    %v796 = vpack.c.b16 %v596, %v592
    %v797 = vpack.c.b16 %v601, %v597
    %v798 = vpack.c.b16 %v602, %v598
    %v799 = vpack.c.b16 %v603, %v599
    %v800 = vpack.c.b16 %v604, %v600
    %v801 = vpack.c.b16 %v609, %v605
    %v802 = vpack.c.b16 %v610, %v606
    %v803 = vpack.c.b16 %v611, %v607
    %v804 = vpack.c.b16 %v612, %v608
    %v805 = vpack.c.b16 %v617, %v613
    %v806 = vpack.c.b16 %v618, %v614
    %v807 = vpack.c.b16 %v619, %v615
    %v808 = vpack.c.b16 %v620, %v616
    %v809 = vpack.c.b16 %v625, %v621
    %v810 = vpack.c.b16 %v626, %v622
    %v811 = vpack.c.b16 %v627, %v623
    %v812 = vpack.c.b16 %v628, %v624
    %v813 = vpack.c.b16 %v633, %v629
    %v814 = vpack.c.b16 %v634, %v630
    %v815 = vpack.c.b16 %v635, %v631
    %v816 = vpack.c.b16 %v636, %v632
    %v817 = vpack.c.b16 %v641, %v637
    %v818 = vpack.c.b16 %v642, %v638
    %v819 = vpack.c.b16 %v643, %v639
    %v820 = vpack.c.b16 %v644, %v640
    %v821 = vpack.c.b16 %v649, %v645
    %v822 = vpack.c.b16 %v650, %v646
    %v823 = vpack.c.b16 %v651, %v647
    %v824 = vpack.c.b16 %v652, %v648
    %v825 = vpack.c.b16 %v657, %v653
    %v826 = vpack.c.b16 %v658, %v654
    %v827 = vpack.c.b16 %v659, %v655
    %v828 = vpack.c.b16 %v660, %v656
    %v829 = vpack.c.b16 %v665, %v661
    %v830 = vpack.c.b16 %v666, %v662
    %v831 = vpack.c.b16 %v667, %v663
    %v832 = vpack.c.b16 %v668, %v664
    %v833 = vpack.c.b16 %v673, %v669
    %v834 = vpack.c.b16 %v674, %v670
    %v835 = vpack.c.b16 %v675, %v671
    %v836 = vpack.c.b16 %v676, %v672
    %v837 = vpack.c.b16 %v681, %v677
    %v838 = vpack.c.b16 %v682, %v678
    %v839 = vpack.c.b16 %v683, %v679
    %v840 = vpack.c.b16 %v684, %v680
    %v841 = vpack.c.b16 %v689, %v685
    %v842 = vpack.c.b16 %v690, %v686
    %v843 = vpack.c.b16 %v691, %v687
    %v844 = vpack.c.b16 %v692, %v688
    %v845 = vpack.c.b16 %v697, %v693
    %v846 = vpack.c.b16 %v698, %v694
    %v847 = vpack.c.b16 %v699, %v695
    %v848 = vpack.c.b16 %v700, %v696
    %v849 = vpack.c.b16 %v705, %v701
    %v850 = vpack.c.b16 %v706, %v702
    %v851 = vpack.c.b16 %v707, %v703
    %v852 = vpack.c.b16 %v708, %v704
    %v853 = vpack.c.b16 %v713, %v709
    %v854 = vpack.c.b16 %v714, %v710
    %v855 = vpack.c.b16 %v715, %v711
    %v856 = vpack.c.b16 %v716, %v712
    %v857 = vpack.c.b16 %v721, %v717
    %v858 = vpack.c.b16 %v722, %v718
    %v859 = vpack.c.b16 %v723, %v719
    %v860 = vpack.c.b16 %v724, %v720
    %v861 = vpack.c.b16 %v729, %v725
    %v862 = vpack.c.b16 %v730, %v726
    %v863 = vpack.c.b16 %v731, %v727
    %v864 = vpack.c.b16 %v732, %v728
    %v865 = vpack.c.b16 %v737, %v733
    %v866 = vpack.c.b16 %v738, %v734
    %v867 = vpack.c.b16 %v739, %v735
    %v868 = vpack.c.b16 %v740, %v736
    %997 = vmatprep.subr.bf16.mxu0 %v770
    %998 = vmatpush1.bf16.msra.mxu0 %v769
    %999 = vmatprep.subr.bf16.mxu0 %v766
    %1000 = vmatpush1.bf16.msra.mxu0 %v765
    %1001 = vmatprep.subr.bf16.mxu0 %v762
    %1002 = vmatpush1.bf16.msra.mxu0 %v761
    %1003 = vmatprep.subr.bf16.mxu0 %v758
    %1004 = vmatpush1.bf16.msra.mxu0 %v757
    %1005 = vmatprep.subr.bf16.mxu0 %v754
    %1006 = vmatpush1.bf16.msra.mxu0 %v753
    %1007 = vmatprep.subr.bf16.mxu0 %v750
    %1008 = vmatpush1.bf16.msra.mxu0 %v749
    %1009 = vmatprep.subr.bf16.mxu0 %v746
    %1010 = vmatpush1.bf16.msra.mxu0 %v745
    %1011 = vmatprep.subr.bf16.mxu0 %v742
    %1012 = vmatpush1.bf16.msra.mxu0 %v741
    %1013 = vmatprep.subr.bf16.mxu0 %v802
    %1014 = vmatpush2.bf16.msra.mxu0 %v801
    %1015 = vmatprep.subr.bf16.mxu0 %v798
    %1016 = vmatpush2.bf16.msra.mxu0 %v797
    %1017 = vmatprep.subr.bf16.mxu0 %v794
    %1018 = vmatpush2.bf16.msra.mxu0 %v793
    %1019 = vmatprep.subr.bf16.mxu0 %v790
    %1020 = vmatpush2.bf16.msra.mxu0 %v789
    %1021 = vmatprep.subr.bf16.mxu0 %v786
    %1022 = vmatpush2.bf16.msra.mxu0 %v785
    %1023 = vmatprep.subr.bf16.mxu0 %v782
    %1024 = vmatpush2.bf16.msra.mxu0 %v781
    %1025 = vmatprep.subr.bf16.mxu0 %v778
    %1026 = vmatpush2.bf16.msra.mxu0 %v777
    %1027 = vmatprep.subr.bf16.mxu0 %v774
    %1028 = vmatpush2.bf16.msra.mxu0 %v773
    %1029 = vmatprep.mubr.bf16.mxu0 %v204
    %1030 = vmatmul.mubr.bf16.gmra.mxu0 %v203
    %v1031 = vpop.f32.mrf.mxu0
    %v1032 = vadd.f32 %v340, %v1031
    %v1033 = vpop.f32.mrf.mxu0
    %v1034 = vadd.f32 %v344, %v1033
    %v1035 = vpop.f32.mrf.mxu0
    %v1036 = vpop.f32.mrf.mxu0
    %1037 = vdwg.mxu0
    %1038 = vmatprep.subr.bf16.mxu0 %v834
    %1039 = vmatpush1.bf16.msra.mxu0 %v833
    %1040 = vmatprep.subr.bf16.mxu0 %v830
    %1041 = vmatpush1.bf16.msra.mxu0 %v829
    %1042 = vmatprep.subr.bf16.mxu0 %v826
    %1043 = vmatpush1.bf16.msra.mxu0 %v825
    %1044 = vmatprep.subr.bf16.mxu0 %v822
    %1045 = vmatpush1.bf16.msra.mxu0 %v821
    %1046 = vmatprep.subr.bf16.mxu0 %v818
    %1047 = vmatpush1.bf16.msra.mxu0 %v817
    %1048 = vmatprep.subr.bf16.mxu0 %v814
    %1049 = vmatpush1.bf16.msra.mxu0 %v813
    %1050 = vmatprep.subr.bf16.mxu0 %v810
    %1051 = vmatpush1.bf16.msra.mxu0 %v809
    %1052 = vmatprep.subr.bf16.mxu0 %v806
    %1053 = vmatpush1.bf16.msra.mxu0 %v805
    %1054 = vmatprep.subr.bf16.mxu0 %v866
    %1055 = vmatpush2.bf16.msra.mxu0 %v865
    %1056 = vmatprep.subr.bf16.mxu0 %v862
    %1057 = vmatpush2.bf16.msra.mxu0 %v861
    %1058 = vmatprep.subr.bf16.mxu0 %v858
    %1059 = vmatpush2.bf16.msra.mxu0 %v857
    %1060 = vmatprep.subr.bf16.mxu0 %v854
    %1061 = vmatpush2.bf16.msra.mxu0 %v853
    %1062 = vmatprep.subr.bf16.mxu0 %v850
    %1063 = vmatpush2.bf16.msra.mxu0 %v849
    %1064 = vmatprep.subr.bf16.mxu0 %v846
    %1065 = vmatpush2.bf16.msra.mxu0 %v845
    %1066 = vmatprep.subr.bf16.mxu0 %v842
    %1067 = vmatpush2.bf16.msra.mxu0 %v841
    %1068 = vmatprep.subr.bf16.mxu0 %v838
    %1069 = vmatpush2.bf16.msra.mxu0 %v837
    %1070 = vmatprep.mubr.bf16.mxu0 %v206
    %1071 = vmatmul.mubr.bf16.gmra.mxu0 %v205
    %v1072 = vpop.f32.mrf.mxu0
    %v1073 = vadd.f32 %v1032, %v1072
    %v1074 = vpop.f32.mrf.mxu0
    %v1075 = vadd.f32 %v1034, %v1074
    %v1076 = vpop.f32.mrf.mxu0
    %v1077 = vpop.f32.mrf.mxu0
    %1078 = vdwg.mxu0
    %1079 = vmatprep.subr.bf16.mxu0 %v772
    %1080 = vmatpush1.bf16.msra.mxu0 %v771
    %1081 = vmatprep.subr.bf16.mxu0 %v768
    %1082 = vmatpush1.bf16.msra.mxu0 %v767
    %1083 = vmatprep.subr.bf16.mxu0 %v764
    %1084 = vmatpush1.bf16.msra.mxu0 %v763
    %1085 = vmatprep.subr.bf16.mxu0 %v760
    %1086 = vmatpush1.bf16.msra.mxu0 %v759
    %1087 = vmatprep.subr.bf16.mxu0 %v756
    %1088 = vmatpush1.bf16.msra.mxu0 %v755
    %1089 = vmatprep.subr.bf16.mxu0 %v752
    %1090 = vmatpush1.bf16.msra.mxu0 %v751
    %1091 = vmatprep.subr.bf16.mxu0 %v748
    %1092 = vmatpush1.bf16.msra.mxu0 %v747
    %1093 = vmatprep.subr.bf16.mxu0 %v744
    %1094 = vmatpush1.bf16.msra.mxu0 %v743
    %1095 = vmatprep.subr.bf16.mxu0 %v804
    %1096 = vmatpush2.bf16.msra.mxu0 %v803
    %1097 = vmatprep.subr.bf16.mxu0 %v800
    %1098 = vmatpush2.bf16.msra.mxu0 %v799
    %1099 = vmatprep.subr.bf16.mxu0 %v796
    %1100 = vmatpush2.bf16.msra.mxu0 %v795
    %1101 = vmatprep.subr.bf16.mxu0 %v792
    %1102 = vmatpush2.bf16.msra.mxu0 %v791
    %1103 = vmatprep.subr.bf16.mxu0 %v788
    %1104 = vmatpush2.bf16.msra.mxu0 %v787
    %1105 = vmatprep.subr.bf16.mxu0 %v784
    %1106 = vmatpush2.bf16.msra.mxu0 %v783
    %1107 = vmatprep.subr.bf16.mxu0 %v780
    %1108 = vmatpush2.bf16.msra.mxu0 %v779
    %1109 = vmatprep.subr.bf16.mxu0 %v776
    %1110 = vmatpush2.bf16.msra.mxu0 %v775
    %1111 = vmatprep.mubr.bf16.mxu0 %v204
    %1112 = vmatmul.mubr.bf16.gmra.mxu0 %v203
    %v1113 = vpop.f32.mrf.mxu0
    %v1114 = vadd.f32 %v348, %v1113
    %v1115 = vpop.f32.mrf.mxu0
    %v1116 = vadd.f32 %v352, %v1115
    %v1117 = vpop.f32.mrf.mxu0
    %v1118 = vpop.f32.mrf.mxu0
    %1119 = vdwg.mxu0
    %1120 = vmatprep.subr.bf16.mxu0 %v836
    %1121 = vmatpush1.bf16.msra.mxu0 %v835
    %1122 = vmatprep.subr.bf16.mxu0 %v832
    %1123 = vmatpush1.bf16.msra.mxu0 %v831
    %1124 = vmatprep.subr.bf16.mxu0 %v828
    %1125 = vmatpush1.bf16.msra.mxu0 %v827
    %1126 = vmatprep.subr.bf16.mxu0 %v824
    %1127 = vmatpush1.bf16.msra.mxu0 %v823
    %1128 = vmatprep.subr.bf16.mxu0 %v820
    %1129 = vmatpush1.bf16.msra.mxu0 %v819
    %1130 = vmatprep.subr.bf16.mxu0 %v816
    %1131 = vmatpush1.bf16.msra.mxu0 %v815
    %1132 = vmatprep.subr.bf16.mxu0 %v812
    %1133 = vmatpush1.bf16.msra.mxu0 %v811
    %1134 = vmatprep.subr.bf16.mxu0 %v808
    %1135 = vmatpush1.bf16.msra.mxu0 %v807
    %1136 = vmatprep.subr.bf16.mxu0 %v868
    %1137 = vmatpush2.bf16.msra.mxu0 %v867
    %1138 = vmatprep.subr.bf16.mxu0 %v864
    %1139 = vmatpush2.bf16.msra.mxu0 %v863
    %1140 = vmatprep.subr.bf16.mxu0 %v860
    %1141 = vmatpush2.bf16.msra.mxu0 %v859
    %1142 = vmatprep.subr.bf16.mxu0 %v856
    %1143 = vmatpush2.bf16.msra.mxu0 %v855
    %1144 = vmatprep.subr.bf16.mxu0 %v852
    %1145 = vmatpush2.bf16.msra.mxu0 %v851
    %1146 = vmatprep.subr.bf16.mxu0 %v848
    %1147 = vmatpush2.bf16.msra.mxu0 %v847
    %1148 = vmatprep.subr.bf16.mxu0 %v844
    %1149 = vmatpush2.bf16.msra.mxu0 %v843
    %1150 = vmatprep.subr.bf16.mxu0 %v840
    %1151 = vmatpush2.bf16.msra.mxu0 %v839
    %1152 = vmatprep.mubr.bf16.mxu0 %v206
    %1153 = vmatmul.mubr.bf16.gmra.mxu0 %v205
    %v1154 = vpop.f32.mrf.mxu0
    %v1155 = vadd.f32 %v1114, %v1154
    %v1156 = vpop.f32.mrf.mxu0
    %v1157 = vadd.f32 %v1116, %v1156
    %v1158 = vpop.f32.mrf.mxu0
    %v1159 = vpop.f32.mrf.mxu0
    %1160 = vdwg.mxu0
    %v1161 = vmax.f32 %v1073, 0.0
    %v1162 = vmax.f32 %v1075, 0.0
    %v1163 = vmax.f32 %v1155, 0.0
    %v1164 = vmax.f32 %v1157, 0.0
    %v1165 = vpack.c.bf16 %v1161, %v1161
    %v1166 = vpack.c.bf16 %v1162, %v1162
    %v1167 = vpack.c.bf16 %v1163, %v1163
    %v1168 = vpack.c.bf16 %v1164, %v1164
    %v1169 = vld [vmem:[%s5] sm:$0xf]
    %v1170 = vld [vmem:[%s5 + $0x4] sm:$0xf]
    %v1171 = vld [vmem:[%s5 + $0x8] sm:$0xf]
    %v1172 = vld [vmem:[%s5 + $0xc] sm:$0xf]
    %v1173 = vld [vmem:[%s5 + $0x10] sm:$0xf]
    %v1174 = vld [vmem:[%s5 + $0x14] sm:$0xf]
    %v1175 = vld [vmem:[%s5 + $0x18] sm:$0xf]
    %v1176 = vld [vmem:[%s5 + $0x1c] sm:$0xf]
    %v1177 = vld [vmem:[%s5 + $0x20] sm:$0xf]
    %v1178 = vld [vmem:[%s5 + $0x24] sm:$0xf]
    %v1179 = vld [vmem:[%s5 + $0x28] sm:$0xf]
    %v1180 = vld [vmem:[%s5 + $0x2c] sm:$0xf]
    %v1181 = vld [vmem:[%s5 + $0x30] sm:$0xf]
    %v1182 = vld [vmem:[%s5 + $0x34] sm:$0xf]
    %v1183 = vld [vmem:[%s5 + $0x38] sm:$0xf]
    %v1184 = vld [vmem:[%s5 + $0x3c] sm:$0xf]
    %v1185 = vld [vmem:[%s5 + $0x40] sm:$0xf]
    %v1186 = vld [vmem:[%s5 + $0x44] sm:$0xf]
    %v1187 = vld [vmem:[%s5 + $0x48] sm:$0xf]
    %v1188 = vld [vmem:[%s5 + $0x4c] sm:$0xf]
    %v1189 = vld [vmem:[%s5 + $0x50] sm:$0xf]
    %v1190 = vld [vmem:[%s5 + $0x54] sm:$0xf]
    %v1191 = vld [vmem:[%s5 + $0x58] sm:$0xf]
    %v1192 = vld [vmem:[%s5 + $0x5c] sm:$0xf]
    %v1193 = vld [vmem:[%s5 + $0x60] sm:$0xf]
    %v1194 = vld [vmem:[%s5 + $0x64] sm:$0xf]
    %v1195 = vld [vmem:[%s5 + $0x68] sm:$0xf]
    %v1196 = vld [vmem:[%s5 + $0x6c] sm:$0xf]
    %v1197 = vld [vmem:[%s5 + $0x70] sm:$0xf]
    %v1198 = vld [vmem:[%s5 + $0x74] sm:$0xf]
    %v1199 = vld [vmem:[%s5 + $0x78] sm:$0xf]
    %v1200 = vld [vmem:[%s5 + $0x7c] sm:$0xf]
    %v1201 = vld [vmem:[%s5 + $0x80] sm:$0xf]
    %v1202 = vld [vmem:[%s5 + $0x84] sm:$0xf]
    %v1203 = vld [vmem:[%s5 + $0x88] sm:$0xf]
    %v1204 = vld [vmem:[%s5 + $0x8c] sm:$0xf]
    %v1205 = vld [vmem:[%s5 + $0x90] sm:$0xf]
    %v1206 = vld [vmem:[%s5 + $0x94] sm:$0xf]
    %v1207 = vld [vmem:[%s5 + $0x98] sm:$0xf]
    %v1208 = vld [vmem:[%s5 + $0x9c] sm:$0xf]
    %v1209 = vld [vmem:[%s5 + $0xa0] sm:$0xf]
    %v1210 = vld [vmem:[%s5 + $0xa4] sm:$0xf]
    %v1211 = vld [vmem:[%s5 + $0xa8] sm:$0xf]
    %v1212 = vld [vmem:[%s5 + $0xac] sm:$0xf]
    %v1213 = vld [vmem:[%s5 + $0xb0] sm:$0xf]
    %v1214 = vld [vmem:[%s5 + $0xb4] sm:$0xf]
    %v1215 = vld [vmem:[%s5 + $0xb8] sm:$0xf]
    %v1216 = vld [vmem:[%s5 + $0xbc] sm:$0xf]
    %v1217 = vld [vmem:[%s5 + $0xc0] sm:$0xf]
    %v1218 = vld [vmem:[%s5 + $0xc4] sm:$0xf]
    %v1219 = vld [vmem:[%s5 + $0xc8] sm:$0xf]
    %v1220 = vld [vmem:[%s5 + $0xcc] sm:$0xf]
    %v1221 = vld [vmem:[%s5 + $0xd0] sm:$0xf]
    %v1222 = vld [vmem:[%s5 + $0xd4] sm:$0xf]
    %v1223 = vld [vmem:[%s5 + $0xd8] sm:$0xf]
    %v1224 = vld [vmem:[%s5 + $0xdc] sm:$0xf]
    %v1225 = vld [vmem:[%s5 + $0xe0] sm:$0xf]
    %v1226 = vld [vmem:[%s5 + $0xe4] sm:$0xf]
    %v1227 = vld [vmem:[%s5 + $0xe8] sm:$0xf]
    %v1228 = vld [vmem:[%s5 + $0xec] sm:$0xf]
    %v1229 = vld [vmem:[%s5 + $0xf0] sm:$0xf]
    %v1230 = vld [vmem:[%s5 + $0xf4] sm:$0xf]
    %v1231 = vld [vmem:[%s5 + $0xf8] sm:$0xf]
    %v1232 = vld [vmem:[%s5 + $0xfc] sm:$0xf]
    %v1233 = vld [vmem:[%s6] sm:$0x1]
    %v1235 = vlaneseq
    %v1236 = vshrl.u32 %v1235, 7
    %v1237 = vsub.s32 0, %v1236
    %v1238 = vrot.slane %v1233, %v1237
    %v1304 = vunpack.c.l.b16 %v1169
    %v1305 = vunpack.c.l.b16 %v1170
    %v1306 = vunpack.c.l.b16 %v1171
    %v1307 = vunpack.c.l.b16 %v1172
    %v1308 = vunpack.c.l.b16 %v1173
    %v1309 = vunpack.c.l.b16 %v1174
    %v1310 = vunpack.c.l.b16 %v1175
    %v1311 = vunpack.c.l.b16 %v1176
    %v1312 = vunpack.c.l.b16 %v1177
    %v1313 = vunpack.c.l.b16 %v1178
    %v1314 = vunpack.c.l.b16 %v1179
    %v1315 = vunpack.c.l.b16 %v1180
    %v1316 = vunpack.c.l.b16 %v1181
    %v1317 = vunpack.c.l.b16 %v1182
    %v1318 = vunpack.c.l.b16 %v1183
    %v1319 = vunpack.c.l.b16 %v1184
    %v1320 = vunpack.c.l.b16 %v1185
    %v1321 = vunpack.c.l.b16 %v1186
    %v1322 = vunpack.c.l.b16 %v1187
    %v1323 = vunpack.c.l.b16 %v1188
    %v1324 = vunpack.c.l.b16 %v1189
    %v1325 = vunpack.c.l.b16 %v1190
    %v1326 = vunpack.c.l.b16 %v1191
    %v1327 = vunpack.c.l.b16 %v1192
    %v1328 = vunpack.c.l.b16 %v1193
    %v1329 = vunpack.c.l.b16 %v1194
    %v1330 = vunpack.c.l.b16 %v1195
    %v1331 = vunpack.c.l.b16 %v1196
    %v1332 = vunpack.c.l.b16 %v1197
    %v1333 = vunpack.c.l.b16 %v1198
    %v1334 = vunpack.c.l.b16 %v1199
    %v1335 = vunpack.c.l.b16 %v1200
    %v1336 = vunpack.c.l.b16 %v1201
    %v1337 = vunpack.c.l.b16 %v1202
    %v1338 = vunpack.c.l.b16 %v1203
    %v1339 = vunpack.c.l.b16 %v1204
    %v1340 = vunpack.c.l.b16 %v1205
    %v1341 = vunpack.c.l.b16 %v1206
    %v1342 = vunpack.c.l.b16 %v1207
    %v1343 = vunpack.c.l.b16 %v1208
    %v1344 = vunpack.c.l.b16 %v1209
    %v1345 = vunpack.c.l.b16 %v1210
    %v1346 = vunpack.c.l.b16 %v1211
    %v1347 = vunpack.c.l.b16 %v1212
    %v1348 = vunpack.c.l.b16 %v1213
    %v1349 = vunpack.c.l.b16 %v1214
    %v1350 = vunpack.c.l.b16 %v1215
    %v1351 = vunpack.c.l.b16 %v1216
    %v1352 = vunpack.c.l.b16 %v1217
    %v1353 = vunpack.c.l.b16 %v1218
    %v1354 = vunpack.c.l.b16 %v1219
    %v1355 = vunpack.c.l.b16 %v1220
    %v1356 = vunpack.c.l.b16 %v1221
    %v1357 = vunpack.c.l.b16 %v1222
    %v1358 = vunpack.c.l.b16 %v1223
    %v1359 = vunpack.c.l.b16 %v1224
    %v1360 = vunpack.c.l.b16 %v1225
    %v1361 = vunpack.c.l.b16 %v1226
    %v1362 = vunpack.c.l.b16 %v1227
    %v1363 = vunpack.c.l.b16 %v1228
    %v1364 = vunpack.c.l.b16 %v1229
    %v1365 = vunpack.c.l.b16 %v1230
    %v1366 = vunpack.c.l.b16 %v1231
    %v1367 = vunpack.c.l.b16 %v1232
    %v1368 = vpack.c.b16 %v1305, %v1304
    %v1369 = vpack.c.b16 %v1307, %v1306
    %v1370 = vpack.c.b16 %v1309, %v1308
    %v1371 = vpack.c.b16 %v1311, %v1310
    %v1372 = vpack.c.b16 %v1313, %v1312
    %v1373 = vpack.c.b16 %v1315, %v1314
    %v1374 = vpack.c.b16 %v1317, %v1316
    %v1375 = vpack.c.b16 %v1319, %v1318
    %v1376 = vpack.c.b16 %v1321, %v1320
    %v1377 = vpack.c.b16 %v1323, %v1322
    %v1378 = vpack.c.b16 %v1325, %v1324
    %v1379 = vpack.c.b16 %v1327, %v1326
    %v1380 = vpack.c.b16 %v1329, %v1328
    %v1381 = vpack.c.b16 %v1331, %v1330
    %v1382 = vpack.c.b16 %v1333, %v1332
    %v1383 = vpack.c.b16 %v1335, %v1334
    %v1384 = vpack.c.b16 %v1337, %v1336
    %v1385 = vpack.c.b16 %v1339, %v1338
    %v1386 = vpack.c.b16 %v1341, %v1340
    %v1387 = vpack.c.b16 %v1343, %v1342
    %v1388 = vpack.c.b16 %v1345, %v1344
    %v1389 = vpack.c.b16 %v1347, %v1346
    %v1390 = vpack.c.b16 %v1349, %v1348
    %v1391 = vpack.c.b16 %v1351, %v1350
    %v1392 = vpack.c.b16 %v1353, %v1352
    %v1393 = vpack.c.b16 %v1355, %v1354
    %v1394 = vpack.c.b16 %v1357, %v1356
    %v1395 = vpack.c.b16 %v1359, %v1358
    %v1396 = vpack.c.b16 %v1361, %v1360
    %v1397 = vpack.c.b16 %v1363, %v1362
    %v1398 = vpack.c.b16 %v1365, %v1364
    %v1399 = vpack.c.b16 %v1367, %v1366
    %1432 = vmatprep.subr.bf16.mxu0 0
    %1433 = vmatpush1.bf16.msra.mxu0 %v1375
    %1434 = vmatprep.subr.bf16.mxu0 0
    %1435 = vmatpush1.bf16.msra.mxu0 %v1374
    %1436 = vmatprep.subr.bf16.mxu0 0
    %1437 = vmatpush1.bf16.msra.mxu0 %v1373
    %1438 = vmatprep.subr.bf16.mxu0 0
    %1439 = vmatpush1.bf16.msra.mxu0 %v1372
    %1440 = vmatprep.subr.bf16.mxu0 0
    %1441 = vmatpush1.bf16.msra.mxu0 %v1371
    %1442 = vmatprep.subr.bf16.mxu0 0
    %1443 = vmatpush1.bf16.msra.mxu0 %v1370
    %1444 = vmatprep.subr.bf16.mxu0 0
    %1445 = vmatpush1.bf16.msra.mxu0 %v1369
    %1446 = vmatprep.subr.bf16.mxu0 0
    %1447 = vmatpush1.bf16.msra.mxu0 %v1368
    %1448 = vmatprep.subr.bf16.mxu0 0
    %1449 = vmatpush2.bf16.msra.mxu0 %v1383
    %1450 = vmatprep.subr.bf16.mxu0 0
    %1451 = vmatpush2.bf16.msra.mxu0 %v1382
    %1452 = vmatprep.subr.bf16.mxu0 0
    %1453 = vmatpush2.bf16.msra.mxu0 %v1381
    %1454 = vmatprep.subr.bf16.mxu0 0
    %1455 = vmatpush2.bf16.msra.mxu0 %v1380
    %1456 = vmatprep.subr.bf16.mxu0 0
    %1457 = vmatpush2.bf16.msra.mxu0 %v1379
    %1458 = vmatprep.subr.bf16.mxu0 0
    %1459 = vmatpush2.bf16.msra.mxu0 %v1378
    %1460 = vmatprep.subr.bf16.mxu0 0
    %1461 = vmatpush2.bf16.msra.mxu0 %v1377
    %1462 = vmatprep.subr.bf16.mxu0 0
    %1463 = vmatpush2.bf16.msra.mxu0 %v1376
    %1464 = vmatprep.mubr.bf16.mxu0 %v1166
    %1465 = vmatmul.mubr.bf16.gmra.mxu0 %v1165
    %v1466 = vpop.f32.mrf.mxu0
    %v1467 = vadd.f32 %v1238, %v1466
    %v1468 = vpop.f32.mrf.mxu0
    %v1469 = vpop.f32.mrf.mxu0
    %v1470 = vpop.f32.mrf.mxu0
    %1471 = vdwg.mxu0
    %1472 = vmatprep.subr.bf16.mxu0 0
    %1473 = vmatpush1.bf16.msra.mxu0 %v1391
    %1474 = vmatprep.subr.bf16.mxu0 0
    %1475 = vmatpush1.bf16.msra.mxu0 %v1390
    %1476 = vmatprep.subr.bf16.mxu0 0
    %1477 = vmatpush1.bf16.msra.mxu0 %v1389
    %1478 = vmatprep.subr.bf16.mxu0 0
    %1479 = vmatpush1.bf16.msra.mxu0 %v1388
    %1480 = vmatprep.subr.bf16.mxu0 0
    %1481 = vmatpush1.bf16.msra.mxu0 %v1387
    %1482 = vmatprep.subr.bf16.mxu0 0
    %1483 = vmatpush1.bf16.msra.mxu0 %v1386
    %1484 = vmatprep.subr.bf16.mxu0 0
    %1485 = vmatpush1.bf16.msra.mxu0 %v1385
    %1486 = vmatprep.subr.bf16.mxu0 0
    %1487 = vmatpush1.bf16.msra.mxu0 %v1384
    %1488 = vmatprep.subr.bf16.mxu0 0
    %1489 = vmatpush2.bf16.msra.mxu0 %v1399
    %1490 = vmatprep.subr.bf16.mxu0 0
    %1491 = vmatpush2.bf16.msra.mxu0 %v1398
    %1492 = vmatprep.subr.bf16.mxu0 0
    %1493 = vmatpush2.bf16.msra.mxu0 %v1397
    %1494 = vmatprep.subr.bf16.mxu0 0
    %1495 = vmatpush2.bf16.msra.mxu0 %v1396
    %1496 = vmatprep.subr.bf16.mxu0 0
    %1497 = vmatpush2.bf16.msra.mxu0 %v1395
    %1498 = vmatprep.subr.bf16.mxu0 0
    %1499 = vmatpush2.bf16.msra.mxu0 %v1394
    %1500 = vmatprep.subr.bf16.mxu0 0
    %1501 = vmatpush2.bf16.msra.mxu0 %v1393
    %1502 = vmatprep.subr.bf16.mxu0 0
    %1503 = vmatpush2.bf16.msra.mxu0 %v1392
    %1504 = vmatprep.mubr.bf16.mxu0 %v1168
    %1505 = vmatmul.mubr.bf16.gmra.mxu0 %v1167
    %v1506 = vpop.f32.mrf.mxu0
    %v1507 = vadd.f32 %v1467, %v1506
    %v1508 = vpop.f32.mrf.mxu0
    %v1509 = vpop.f32.mrf.mxu0
    %v1510 = vpop.f32.mrf.mxu0
    %1511 = vdwg.mxu0
    %v1512 = vlaneseq
    %v1513 = vand.u32 %v1512, 127
    %v1514 = vmax.f32 %v1507, -20.0
    %v1515 = vmin.f32 %v1514, 2.0
    %vm1516 = vcmp.ge.s32.totalorder %v1513, 2
    %v1517 = vsel %vm1516, %v1515, %v1507
    %vm1518 = vcmask 31744
    %1519 = vst.msk [vmem:[%s7] sm:$0xff] %vm1518, %v1517
    // Predicated region
    $region34: #{policy_forward.1} parent=1 // pred_check
      _
    $region35: #{policy_forward.1} parent=1 // pred_check_branch
      %1521 = sbr.rel (0) target = $region37
    $region36: #{policy_forward.1} parent=1 // pred_region
      _
    $region37: #{policy_forward.1} parent=1 // pred_fallthru
      _
    // Predicated region
    $region38: #{policy_forward.1} parent=1 // pred_check
      _
    $region39: #{policy_forward.1} parent=1 // pred_check_branch
      %1523 = sbr.rel (0) target = $region41
    $region40: #{policy_forward.1} parent=1 // pred_region
      _
    $region41: #{policy_forward.1} parent=1 // pred_fallthru
      _
    %1524 = vsyncpa [#allocation3], 1

</llo_original>
